<compile_context>
chip_gen: v6e
topology: v6e:2x2x1
jax: 0.10.0
libtpu: 0.0.40
codegen_flags: <defaults>
</compile_context>

<pallas_src>
import jax
import jax.numpy as jnp
from jax.experimental import pallas as pl
from jax.experimental.pallas import tpu as pltpu

# "hyperparameters" implied by the module (hp.N_CHANNELS / hp.N_FILTERS)
N_CHANNELS = 4
N_FILTERS = 32
BN_EPS = 1e-5


def conv_bn_relu_kernel(p_ref, w_ref, shift_ref, o_ref):
    # p_ref:     (1, 9*C_in, H*W)  channel-major im2col patches (one image)
    # w_ref:     (C_out, 9*C_in)   conv weights with BN scale folded in
    # shift_ref: (C_out, 1)        beta - running_mean * scale
    # o_ref:     (1, C_out, H*W)   NCHW-ordered, lane-dense output (H*W >= 128)
    acc = jnp.dot(w_ref[...], p_ref[0], preferred_element_type=jnp.float32)
    y = jnp.maximum(acc + shift_ref[...], 0.0)
    o_ref[0] = y.astype(o_ref.dtype)


def input_block_forward(x_nchw, w_oihw, gamma, beta, running_mean, running_var):
    """Wrapper: NCHW input -> im2col -> Pallas matmul kernel -> NCHW output."""
    N, C_in, H, W = x_nchw.shape
    C_out = w_oihw.shape[0]
    K = 9 * C_in
    HW = H * W

    # ---- wrapper-side layout prep (glue, not the hot path) -----------------
    # im2col directly in NCHW (no layout transpose): tap order (kh, kw, c_in)
    # matches the reshaped weight below.
    x_pad = jnp.pad(x_nchw, ((0, 0), (0, 0), (1, 1), (1, 1)))
    taps = [x_pad[:, :, kh:kh + H, kw:kw + W]
            for kh in range(3) for kw in range(3)]
    patches = jnp.stack(taps, axis=1).reshape(N, K, HW)

    # Fold eval-mode BatchNorm into the weights (scale) and a shift vector.
    scale = gamma / jnp.sqrt(running_var + BN_EPS)              # (C_out,)
    shift = (beta - running_mean * scale).reshape(C_out, 1)     # (C_out, 1)
    # (O, I, 3, 3) -> (O, 3, 3, I) -> (C_out, 9*C_in), matching the tap order.
    w_k = jnp.transpose(w_oihw, (0, 2, 3, 1)).reshape(C_out, K) * scale[:, None]

    out = pl.pallas_call(
        conv_bn_relu_kernel,
        out_shape=jax.ShapeDtypeStruct((N, C_out, HW), x_nchw.dtype),
        grid_spec=pltpu.PrefetchScalarGridSpec(
            num_scalar_prefetch=0,
            grid=(N,),
            in_specs=[
                pl.BlockSpec((1, K, HW), lambda n: (n, 0, 0)),
                pl.BlockSpec((C_out, K), lambda n: (0, 0)),
                pl.BlockSpec((C_out, 1), lambda n: (0, 0)),
            ],
            out_specs=pl.BlockSpec((1, C_out, HW), lambda n: (n, 0, 0)),
        ),
        compiler_params=pltpu.CompilerParams(
            dimension_semantics=("parallel",)
        ),
    )(patches, w_k, shift)

    # (N, C_out, H*W) is already channel-major -> contiguous reshape to NCHW.
    return out.reshape(N, C_out, H, W)


def _reference(x_nchw, w_oihw, gamma, beta, running_mean, running_var):
    """Plain-JAX reference for correctness checking."""
    y = jax.lax.conv_general_dilated(
        x_nchw, w_oihw, window_strides=(1, 1), padding=((1, 1), (1, 1)),
        dimension_numbers=("NCHW", "OIHW", "NCHW"),
    )
    scale = gamma / jnp.sqrt(running_var + BN_EPS)
    y = y * scale.reshape(1, -1, 1, 1) + (beta - running_mean * scale
                                          ).reshape(1, -1, 1, 1)
    return jnp.maximum(y, 0.0)


if __name__ == "__main__":
    key = jax.random.PRNGKey(0)
    k_x, k_w, k_g, k_b, k_m, k_v = jax.random.split(key, 6)

    N, H, W = 2, 16, 16
    x = jax.random.normal(k_x, (N, N_CHANNELS, H, W), dtype=jnp.float32)

    # deterministic synthetic parameters
    fan_in = N_CHANNELS * 3 * 3
    w = jax.random.normal(k_w, (N_FILTERS, N_CHANNELS, 3, 3),
                          dtype=jnp.float32) * (1.0 / jnp.sqrt(fan_in))
    gamma = 1.0 + 0.1 * jax.random.normal(k_g, (N_FILTERS,), dtype=jnp.float32)
    beta = 0.1 * jax.random.normal(k_b, (N_FILTERS,), dtype=jnp.float32)
    running_mean = 0.1 * jax.random.normal(k_m, (N_FILTERS,), dtype=jnp.float32)
    running_var = 1.0 + 0.1 * jax.random.uniform(k_v, (N_FILTERS,),
                                                 dtype=jnp.float32)

    out = input_block_forward(x, w, gamma, beta, running_mean, running_var)
    out = jax.block_until_ready(out)

    ref = _reference(x, w, gamma, beta, running_mean, running_var)
    assert out.shape == (N, N_FILTERS, H, W)
    assert jnp.allclose(out, ref, atol=1e-4, rtol=1e-4)

    print("KERNEL_OK")
</pallas_src>

<mosaic_0001>
module attributes {stable_mosaic.version = 11 : i64} {
  func.func @conv_bn_relu_kernel(%arg0: i32, %arg1: memref<1x36x256xf32, #tpu.memory_space<vmem>>, %arg2: memref<32x36xf32, #tpu.memory_space<vmem>>, %arg3: memref<32x1xf32, #tpu.memory_space<vmem>>, %arg4: memref<1x32x256xf32, #tpu.memory_space<vmem>>) attributes {dimension_semantics = [#tpu.dimension_semantics<parallel>], iteration_bounds = array<i64: 2>, scalar_prefetch = 0 : i64, scratch_operands = 0 : i64, tpu.core_type = #tpu.core_type<tc>, window_params = [{transform_indices = @transform_0, window_bounds = array<i64: 1, 36, 256>}, {pipeline_mode = #tpu.pipeline_mode<synchronous>, transform_indices = @transform_1, window_bounds = array<i64: 32, 36>}, {pipeline_mode = #tpu.pipeline_mode<synchronous>, transform_indices = @transform_2, window_bounds = array<i64: 32, 1>}, {transform_indices = @transform_3, window_bounds = array<i64: 1, 32, 256>}]} {
    %c0 = arith.constant 0 : index
    %c0_0 = arith.constant 0 : index
    %0 = vector.load %arg2[%c0, %c0_0] : memref<32x36xf32, #tpu.memory_space<vmem>>, vector<32x36xf32>
    %c0_1 = arith.constant 0 : index
    %c0_2 = arith.constant 0 : index
    %c0_3 = arith.constant 0 : index
    %1 = vector.load %arg1[%c0_1, %c0_2, %c0_3] : memref<1x36x256xf32, #tpu.memory_space<vmem>>, vector<1x36x256xf32>
    %2 = vector.shape_cast %1 : vector<1x36x256xf32> to vector<36x256xf32>
    %cst = arith.constant dense<0.000000e+00> : vector<32x256xf32>
    %3 = tpu.matmul %0, %2, %cst {dimension_numbers = #tpu.dot_dimension_numbers<[1], [0], [0], [1], [0, 0, 1, 1], [], []>} : vector<32x36xf32>, vector<36x256xf32>, vector<32x256xf32> -> vector<32x256xf32>
    %c0_4 = arith.constant 0 : index
    %c0_5 = arith.constant 0 : index
    %4 = vector.load %arg3[%c0_4, %c0_5] : memref<32x1xf32, #tpu.memory_space<vmem>>, vector<32x1xf32>
    %5 = vector.broadcast %4 : vector<32x1xf32> to vector<32x256xf32>
    %6 = arith.addf %3, %5 : vector<32x256xf32>
    %cst_6 = arith.constant 0.000000e+00 : f32
    %7 = vector.broadcast %cst_6 : f32 to vector<32x256xf32>
    %8 = arith.maximumf %6, %7 : vector<32x256xf32>
    %c0_7 = arith.constant 0 : index
    %c0_8 = arith.constant 0 : index
    %c0_9 = arith.constant 0 : index
    %9 = vector.load %arg4[%c0_7, %c0_8, %c0_9] : memref<1x32x256xf32, #tpu.memory_space<vmem>>, vector<1x32x256xf32>
    %10 = vector.shape_cast %9 : vector<1x32x256xf32> to vector<32x256xf32>
    %11 = vector.shape_cast %8 : vector<32x256xf32> to vector<1x32x256xf32>
    tpu.vector_store %arg4[%c0_7, %c0_8, %c0_9], %11 {strides = array<i32>} : memref<1x32x256xf32, #tpu.memory_space<vmem>>, vector<1x32x256xf32>,
    return
  }
  func.func @transform_0(%arg0: i32) -> (i32, i32, i32) {
    %c0_i32 = arith.constant 0 : i32
    %c0_i32_0 = arith.constant 0 : i32
    %c0_i32_1 = arith.constant 0 : i32
    return %arg0, %c0_i32, %c0_i32_0 : i32, i32, i32
  }
  func.func @transform_1(%arg0: i32) -> (i32, i32) {
    %c0_i32 = arith.constant 0 : i32
    %c0_i32_0 = arith.constant 0 : i32
    %c0_i32_1 = arith.constant 0 : i32
    return %c0_i32, %c0_i32_0 : i32, i32
  }
  func.func @transform_2(%arg0: i32) -> (i32, i32) {
    %c0_i32 = arith.constant 0 : i32
    %c0_i32_0 = arith.constant 0 : i32
    %c0_i32_1 = arith.constant 0 : i32
    return %c0_i32, %c0_i32_0 : i32, i32
  }
  func.func @transform_3(%arg0: i32) -> (i32, i32, i32) {
    %c0_i32 = arith.constant 0 : i32
    %c0_i32_0 = arith.constant 0 : i32
    %c0_i32_1 = arith.constant 0 : i32
    return %arg0, %c0_i32, %c0_i32_0 : i32, i32, i32
  }
}

</mosaic_0001>

<llo_original>
// kernel: tpu_custom_call.1
$region0: #{tpu_custom_call.1}
  #allocation0 [shape = 'u32[]', space=smem, size = 0x4, offset = 0x4, fixed_abs, tag = 'smem constant byte address 0x4 - core index']
  #allocation1 [shape = 'u32[144,128]{1,0:T(1,128)}', space=vmem, size = 0x12000, scoped, tag = 'internal scratch']
  %s0 = inlined_call_operand.vmem [shape: f32[2,36,256], index: 0, kind: input, shape index: {}]
  %s1 = inlined_call_operand.vmem [shape: f32[32,36], index: 1, kind: input, shape index: {}]
  %s2 = inlined_call_operand.vmem [shape: f32[32,1], index: 2, kind: input, shape index: {}]
  %s3 = inlined_call_operand.hbm [shape: f32[2,32,256], index: 3, kind: output, shape index: {}]
  %s4 = sld [smem:[#allocation0]]
  $region45: #{tpu_custom_call.1} parent=0
    _
  %s6 = ssub.s32 1, %s4
  %s7 = scalar_select 0, %s6, %s4
  $region1: #{tpu_custom_call.1} parent=0
    #allocation2 [shape = 'u8[65536]{0}', space=vmem, size = 0x10000, scoped, tag = 'output window, operand 0']
    #allocation3 [shape = 's32[2]{0}', space=sflag, size = 0x8, scoped, tag = 'scoped memory for tpu_custom_call.1']
    %8 = vsyncpa [#allocation3], 0
    %s9 = scalar_lea.sflag [#allocation3], 1
    %10 = vsyncpa %s9, 0
    loop: start=0, step=1, limit=4
    $region2: #{tpu_custom_call.1} parent=1 // loop_pre_header
      _
    $region3: #{tpu_custom_call.1} parent=1 // loop_header
      %s12 = sphi 0, %s16
      %p13 = scmp.ge.s32.totalorder %s12, 4
      %s22 = sphi 0, %s24
      %s25 = sphi 0, %s22
      %s26 = sphi 0, %s25
      %s42 = sphi 0, %s26
      %s46 = sphi 0, %s46
      %s48 = sphi 0, %s46
      %s49 = sphi 0, %s48
      %s63 = sphi 0, %s49
      %s67 = sphi 0, %s67
      %s69 = sphi 0, %s67
      %s70 = sphi 0, %s69
      %s84 = sphi 0, %s70
      %s90 = sphi 0, %s92
      %s93 = sphi 0, %s90
      %s94 = sphi 0, %s93
      %s110 = sphi 0, %s94
    $region4: #{tpu_custom_call.1} parent=1 // loop_header_branch
      %15 = sbr.rel (%p13) target = $region8
    $region5: #{tpu_custom_call.1} parent=1 // loop_body
      %s17 = ssub.s32 %s12, 1
      %s18 = ssub.s32 %s12, 2
      %s19 = sadd.s32 %s12, 1
      %s20 = ssub.s32 %s12, %s19
      %p21 = scmp.eq.s32.totalorder %s20, 0
      %s23 = sadd.s32 %s22, 1
      %s24 = scalar_select %p21, %s22, %s23
      %p27 = pneg %p21
      %p28 = scmp.eq.s32.totalorder %s12, 1
      %p29 = por %p27, %p28
      %p30 = scmp.ne.s32.totalorder %s22, %s25
      %p31 = scmp.eq.s32.totalorder %s12, 0
      %p32 = por %p30, %p31
      %p33 = scmp.ne.s32.totalorder %s22, %s25
      %p34 = scmp.eq.s32.totalorder %s17, 1
      %p35 = por %p33, %p34
      %p36 = scmp.ne.s32.totalorder %s25, %s26
      %p37 = scmp.eq.s32.totalorder %s17, 0
      %p38 = por %p36, %p37
      %p39 = scmp.ne.s32.totalorder %s25, %s26
      %p40 = scmp.eq.s32.totalorder %s18, 1
      %p41 = por %p39, %p40
      %p43 = scmp.ne.s32.totalorder %s26, %s42
      %p44 = scmp.eq.s32.totalorder %s18, 0
      %p45 = por %p43, %p44
      %s47 = sadd.s32 %s46, 1
      %p50 = scmp.eq.s32.totalorder %s12, 1
      %p51 = scmp.ne.s32.totalorder %s46, %s48
      %p52 = scmp.eq.s32.totalorder %s12, 0
      %p53 = por %p51, %p52
      %p54 = scmp.ne.s32.totalorder %s46, %s48
      %p55 = scmp.eq.s32.totalorder %s17, 1
      %p56 = por %p54, %p55
      %p57 = scmp.ne.s32.totalorder %s48, %s49
      %p58 = scmp.eq.s32.totalorder %s17, 0
      %p59 = por %p57, %p58
      %p60 = scmp.ne.s32.totalorder %s48, %s49
      %p61 = scmp.eq.s32.totalorder %s18, 1
      %p62 = por %p60, %p61
      %p64 = scmp.ne.s32.totalorder %s49, %s63
      %p65 = scmp.eq.s32.totalorder %s18, 0
      %p66 = por %p64, %p65
      %s68 = sadd.s32 %s67, 1
      %p71 = scmp.eq.s32.totalorder %s12, 1
      %p72 = scmp.ne.s32.totalorder %s67, %s69
      %p73 = scmp.eq.s32.totalorder %s12, 0
      %p74 = por %p72, %p73
      %p75 = scmp.ne.s32.totalorder %s67, %s69
      %p76 = scmp.eq.s32.totalorder %s17, 1
      %p77 = por %p75, %p76
      %p78 = scmp.ne.s32.totalorder %s69, %s70
      %p79 = scmp.eq.s32.totalorder %s17, 0
      %p80 = por %p78, %p79
      %p81 = scmp.ne.s32.totalorder %s69, %s70
      %p82 = scmp.eq.s32.totalorder %s18, 1
      %p83 = por %p81, %p82
      %p85 = scmp.ne.s32.totalorder %s70, %s84
      %p86 = scmp.eq.s32.totalorder %s18, 0
      %p87 = por %p85, %p86
      %s88 = ssub.s32 %s12, %s19
      %p89 = scmp.eq.s32.totalorder %s88, 0
      %s91 = sadd.s32 %s90, 1
      %s92 = scalar_select %p89, %s90, %s91
      %p95 = pneg %p89
      %p96 = scmp.eq.s32.totalorder %s12, 1
      %p97 = por %p95, %p96
      %p98 = scmp.ne.s32.totalorder %s90, %s93
      %p99 = scmp.eq.s32.totalorder %s12, 0
      %p100 = por %p98, %p99
      %p101 = scmp.ne.s32.totalorder %s90, %s93
      %p102 = scmp.eq.s32.totalorder %s17, 1
      %p103 = por %p101, %p102
      %p104 = scmp.ne.s32.totalorder %s93, %s94
      %p105 = scmp.eq.s32.totalorder %s17, 0
      %p106 = por %p104, %p105
      %p107 = scmp.ne.s32.totalorder %s93, %s94
      %p108 = scmp.eq.s32.totalorder %s18, 1
      %p109 = por %p107, %p108
      %p111 = scmp.ne.s32.totalorder %s94, %s110
      %p112 = scmp.eq.s32.totalorder %s18, 0
      %p113 = por %p111, %p112
      %p114 = scmp.le.s32.totalorder 1, %s12
      %p115 = scmp.lt.s32.totalorder %s12, 3
      %p116 = pnand %p114, %p115
      %p117 = pneg %p116
      // Predicated region
      $region9: #{tpu_custom_call.1} parent=5 // pred_check
        _
      $region10: #{tpu_custom_call.1} parent=5 // pred_check_branch
        %119 = sbr.rel (%p116) target = $region12
      $region11: #{tpu_custom_call.1} parent=5 // pred_region
        %s120 = ssub.s32 %s12, 1
        // Predicated region
        $region13: #{tpu_custom_call.1} parent=11 // pred_check
          %p121 = pneg %p59
        $region14: #{tpu_custom_call.1} parent=11 // pred_check_branch
          %123 = sbr.rel (%p121) target = $region16
        $region15: #{tpu_custom_call.1} parent=11 // pred_region
          _
        $region16: #{tpu_custom_call.1} parent=11 // pred_fallthru
          _
        // Predicated region
        $region17: #{tpu_custom_call.1} parent=11 // pred_check
          %p124 = pneg %p80
        $region18: #{tpu_custom_call.1} parent=11 // pred_check_branch
          %126 = sbr.rel (%p124) target = $region20
        $region19: #{tpu_custom_call.1} parent=11 // pred_region
          _
        $region20: #{tpu_custom_call.1} parent=11 // pred_fallthru
          _
      $region12: #{tpu_custom_call.1} parent=5 // pred_fallthru
        _
      %p127 = scmp.lt.s32.totalorder %s12, 2
      // Predicated region
      $region21: #{tpu_custom_call.1} parent=5 // pred_check
        %p128 = pneg %p127
      $region22: #{tpu_custom_call.1} parent=5 // pred_check_branch
        %130 = sbr.rel (%p128) target = $region24
      $region23: #{tpu_custom_call.1} parent=5 // pred_region
        // Predicated region
        $region25: #{tpu_custom_call.1} parent=23 // pred_check
          %p131 = pneg %p32
        $region26: #{tpu_custom_call.1} parent=23 // pred_check_branch
          %133 = sbr.rel (%p131) target = $region28
        $region27: #{tpu_custom_call.1} parent=23 // pred_region
          %p134 = scmp.lt.s32.totalorder %s12, 1
          %s135 = scalar_select %p134, %s12, 1
          %s136 = smul.addr %s135, 10
          %s137 = smul.addr %s136, 8
          %s138 = scalar_lea.vmem %s0, %s137
        $region28: #{tpu_custom_call.1} parent=23 // pred_fallthru
          _
      $region24: #{tpu_custom_call.1} parent=5 // pred_fallthru
        _
      %p139 = scmp.le.s32.totalorder 1, %s12
      %p140 = scmp.lt.s32.totalorder %s12, 3
      %p141 = pnand %p139, %p140
      %p142 = pneg %p141
      // Predicated region
      $region29: #{tpu_custom_call.1} parent=5 // pred_check
        _
      $region30: #{tpu_custom_call.1} parent=5 // pred_check_branch
        %144 = sbr.rel (%p141) target = $region32
      $region31: #{tpu_custom_call.1} parent=5 // pred_region
        %s145 = ssub.s32 %s12, 1
        %p146 = scmp.lt.s32.totalorder %s17, 1
        %s147 = scalar_select %p146, %s17, 1
        %s148 = smul.addr %s147, 10
        %s149 = smul.addr %s148, 8
        %s150 = scalar_lea.vmem %s0, %s149
        %p151 = pneg %p38
        %p152 = pneg %p35
        %p153 = pneg %p59
        %p154 = pneg %p56
        %p155 = pneg %p80
        %p156 = pneg %p77
        %p157 = pneg %p106
        %p158 = pneg %p103
        %s159 = sand.u32 %s93, 1
        %s160 = scalar_lea.sflag [#allocation3], %s159
        %s161 = sand.u32 %s93, 1
        %s162 = smul.addr %s161, 64
        %s163 = scalar_lea.vmem [#allocation2], %s162
        %p164 = scmp.lt.s32.totalorder %s17, 1
        %s165 = scalar_select %p164, %s17, 1
        %s166 = smul.addr %s165, 10
        %s167 = smul.addr %s166, 8
        %s168 = scalar_lea.vmem %s0, %s167
        %v169 = vld [vmem:[%s1] sm:$0xff]
        %v170 = vld [vmem:[%s1 + $0x8] sm:$0xff]
        %v171 = vld [vmem:[%s1 + $0x10] sm:$0xff]
        %v172 = vld [vmem:[%s1 + $0x18] sm:$0xff]
        %v173 = vld [vmem:[%s168] sm:$0xff]
        %v174 = vld [vmem:[%s168 + $0x8] sm:$0xff]
        %v175 = vld [vmem:[%s168 + $0x10] sm:$0xff]
        %v176 = vld [vmem:[%s168 + $0x18] sm:$0xff]
        %v177 = vld [vmem:[%s168 + $0x20] sm:$0xff]
        %v178 = vld [vmem:[%s168 + $0x28] sm:$0xff]
        %v179 = vld [vmem:[%s168 + $0x30] sm:$0xff]
        %v180 = vld [vmem:[%s168 + $0x38] sm:$0xff]
        %v181 = vld [vmem:[%s168 + $0x40] sm:$0xf]
        %v182 = vld [vmem:[%s168 + $0x48] sm:$0xf]
        %v183 = vld [vmem:[%s2] sm:$0xff]
        %v184 = vld [vmem:[%s2 + $0x8] sm:$0xff]
        %v185 = vld [vmem:[%s2 + $0x10] sm:$0xff]
        %v186 = vld [vmem:[%s2 + $0x18] sm:$0xff]
        %188 = vset.pattern.permute.xlu0 0
        %189 = vperm.xlu0 %188, %v183
        %v190 = vpop.permute.xlu0 %189
        %193 = vset.pattern.permute.xlu0 0
        %194 = vperm.xlu0 %193, %v184
        %v195 = vpop.permute.xlu0 %194
        %198 = vset.pattern.permute.xlu0 0
        %199 = vperm.xlu0 %198, %v185
        %v200 = vpop.permute.xlu0 %199
        %203 = vset.pattern.permute.xlu0 0
        %204 = vperm.xlu0 %203, %v186
        %v205 = vpop.permute.xlu0 %204
        %vm207 = vcmask 293888
        %v209 = vsel %vm207, %v169, 0
        %v212 = vsel %vm207, %v170, 0
        %v215 = vsel %vm207, %v171, 0
        %v218 = vsel %vm207, %v172, 0
        %vm220 = vcmask 1043456
        %v222 = vsel %vm220, %v181, 0
        %v225 = vsel %vm220, %v182, 0
        %227 = vmatprep.subr.mxu0 0.0
        %228 = vmatpush1.msra.mxu0 0.0
        %229 = vmatprep.subr.mxu0 0.0
        %230 = vmatpush1.msra.mxu0 0.0
        %231 = vmatprep.subr.mxu0 0.0
        %232 = vmatpush1.msra.mxu0 0.0
        %233 = vmatprep.subr.mxu0 0.0
        %234 = vmatpush1.msra.mxu0 0.0
        %235 = vmatprep.subr.mxu0 0.0
        %236 = vmatpush1.msra.mxu0 0.0
        %237 = vmatprep.subr.mxu0 0.0
        %238 = vmatpush1.msra.mxu0 0.0
        %239 = vmatprep.subr.mxu0 0.0
        %240 = vmatpush1.msra.mxu0 0.0
        %241 = vmatprep.subr.mxu0 0.0
        %242 = vmatpush1.msra.mxu0 0.0
        %243 = vmatprep.subr.mxu0 0.0
        %244 = vmatpush1.msra.mxu0 0.0
        %245 = vmatprep.subr.mxu0 0.0
        %246 = vmatpush1.msra.mxu0 0.0
        %247 = vmatprep.subr.mxu0 0.0
        %248 = vmatpush1.msra.mxu0 0.0
        %249 = vmatprep.subr.mxu0 %v225
        %250 = vmatpush1.msra.mxu0 %v222
        %251 = vmatprep.subr.mxu0 %v180
        %252 = vmatpush1.msra.mxu0 %v179
        %253 = vmatprep.subr.mxu0 %v178
        %254 = vmatpush1.msra.mxu0 %v177
        %255 = vmatprep.subr.mxu0 %v176
        %256 = vmatpush1.msra.mxu0 %v175
        %257 = vmatprep.subr.mxu0 %v174
        %258 = vmatpush1.msra.mxu0 %v173
        %259 = vmatprep.subr.mxu0 0.0
        %260 = vmatpush2.msra.mxu0 0.0
        %261 = vmatprep.subr.mxu0 0.0
        %262 = vmatpush2.msra.mxu0 0.0
        %263 = vmatprep.subr.mxu0 0.0
        %264 = vmatpush2.msra.mxu0 0.0
        %265 = vmatprep.subr.mxu0 0.0
        %266 = vmatpush2.msra.mxu0 0.0
        %267 = vmatprep.subr.mxu0 0.0
        %268 = vmatpush2.msra.mxu0 0.0
        %269 = vmatprep.subr.mxu0 0.0
        %270 = vmatpush2.msra.mxu0 0.0
        %271 = vmatprep.subr.mxu0 0.0
        %272 = vmatpush2.msra.mxu0 0.0
        %273 = vmatprep.subr.mxu0 0.0
        %274 = vmatpush2.msra.mxu0 0.0
        %275 = vmatprep.subr.mxu0 0.0
        %276 = vmatpush2.msra.mxu0 0.0
        %277 = vmatprep.subr.mxu0 0.0
        %278 = vmatpush2.msra.mxu0 0.0
        %279 = vmatprep.subr.mxu0 0.0
        %280 = vmatpush2.msra.mxu0 0.0
        %281 = vmatprep.subr.mxu0 0.0
        %282 = vmatpush2.msra.mxu0 0.0
        %283 = vmatprep.subr.mxu0 0.0
        %284 = vmatpush2.msra.mxu0 0.0
        %285 = vmatprep.subr.mxu0 0.0
        %286 = vmatpush2.msra.mxu0 0.0
        %287 = vmatprep.subr.mxu0 0.0
        %288 = vmatpush2.msra.mxu0 0.0
        %289 = vmatprep.subr.mxu0 0.0
        %290 = vmatpush2.msra.mxu0 0.0
        %291 = vmatprep.mubr.f32.mxu0 0.0
        %292 = vmatmul.mubr.f32.gmra.mxu0 %v209
        %v293 = vpop.f32.mrf.mxu0
        %v294 = vadd.f32 %v190, %v293
        %v295 = vpop.f32.mrf.mxu0
        %v296 = vadd.f32 %v190, %v295
        %297 = vmatprep.mubr.f32.mxu0 0.0
        %298 = vmatmul.mubr.f32.gmra.mxu0 %v212
        %v299 = vpop.f32.mrf.mxu0
        %v300 = vadd.f32 %v195, %v299
        %v301 = vpop.f32.mrf.mxu0
        %v302 = vadd.f32 %v195, %v301
        %303 = vmatprep.mubr.f32.mxu0 0.0
        %304 = vmatmul.mubr.f32.gmra.mxu0 %v215
        %v305 = vpop.f32.mrf.mxu0
        %v306 = vadd.f32 %v200, %v305
        %v307 = vpop.f32.mrf.mxu0
        %v308 = vadd.f32 %v200, %v307
        %309 = vmatprep.mubr.f32.mxu0 0.0
        %310 = vmatmul.mubr.f32.gmra.mxu0 %v218
        %v311 = vpop.f32.mrf.mxu0
        %v312 = vadd.f32 %v205, %v311
        %v313 = vpop.f32.mrf.mxu0
        %v314 = vadd.f32 %v205, %v313
        %315 = vdwg.mxu0
        %v316 = vmax.f32 %v294, 0.0
        %v317 = vmax.f32 %v296, 0.0
        %v318 = vmax.f32 %v300, 0.0
        %v319 = vmax.f32 %v302, 0.0
        %v320 = vmax.f32 %v306, 0.0
        %v321 = vmax.f32 %v308, 0.0
        %v322 = vmax.f32 %v312, 0.0
        %v323 = vmax.f32 %v314, 0.0
        %324 = vst [vmem:[%s163] sm:$0xff] %v316
        %325 = vst [vmem:[%s163 + $0x8] sm:$0xff] %v317
        %326 = vst [vmem:[%s163 + $0x10] sm:$0xff] %v318
        %327 = vst [vmem:[%s163 + $0x18] sm:$0xff] %v319
        %328 = vst [vmem:[%s163 + $0x20] sm:$0xff] %v320
        %329 = vst [vmem:[%s163 + $0x28] sm:$0xff] %v321
        %330 = vst [vmem:[%s163 + $0x30] sm:$0xff] %v322
        %331 = vst [vmem:[%s163 + $0x38] sm:$0xff] %v323
        %s332 = sand.u32 %s93, 1
        %s333 = scalar_lea.sflag [#allocation3], %s332
        %s334 = sand.u32 %s93, 1
        %s335 = smul.addr %s334, 64
        %s336 = scalar_lea.vmem [#allocation2], %s335
        // Predicated region
        $region33: #{tpu_custom_call.1} parent=31 // pred_check
          %p337 = pneg %p103
        $region34: #{tpu_custom_call.1} parent=31 // pred_check_branch
          %339 = sbr.rel (%p337) target = $region36
        $region35: #{tpu_custom_call.1} parent=31 // pred_region
          %s341 = ssub.s32 1024, 1024
          %342 = vsyncadd %s333, %s341
          %s343 = smul.addr %s17, 8
          %s344 = smul.addr %s343, 128
          %s345 = scalar_lea.hbm %s3, %s344
          %s346 = sshll.u32 %s336, 4
          %s347 = int_to_ptr.vmem [resolvable:$true] %s346
          %352 = dma.vmem_to_hbm [thread:$0]  %s347, 1024, %s345, %s333, 256, 256, 16
        $region36: #{tpu_custom_call.1} parent=31 // pred_fallthru
          _
      $region32: #{tpu_custom_call.1} parent=5 // pred_fallthru
        _
      %p353 = scmp.le.s32.totalorder 2, %s12
      // Predicated region
      $region37: #{tpu_custom_call.1} parent=5 // pred_check
        %p354 = pneg %p353
      $region38: #{tpu_custom_call.1} parent=5 // pred_check_branch
        %356 = sbr.rel (%p354) target = $region40
      $region39: #{tpu_custom_call.1} parent=5 // pred_region
        %s357 = ssub.s32 %s12, 2
        // Predicated region
        $region41: #{tpu_custom_call.1} parent=39 // pred_check
          %p358 = pneg %p109
        $region42: #{tpu_custom_call.1} parent=39 // pred_check_branch
          %360 = sbr.rel (%p358) target = $region44
        $region43: #{tpu_custom_call.1} parent=39 // pred_region
          %s361 = sand.u32 %s94, 1
          %s362 = scalar_lea.sflag [#allocation3], %s361
          %s363 = sand.u32 %s94, 1
          %s364 = smul.addr %s363, 64
          %s365 = scalar_lea.vmem [#allocation2], %s364
          %366 = dma.done %s362, 1024
        $region44: #{tpu_custom_call.1} parent=39 // pred_fallthru
          _
      $region40: #{tpu_custom_call.1} parent=5 // pred_fallthru
        _
    $region6: #{tpu_custom_call.1} parent=1 // loop_footer
      %s16 = sadd.s32 1, %s12
    $region7: #{tpu_custom_call.1} parent=1 // loop_footer_branch
      %11 = sbr.rel target = $region3
    $region8: #{tpu_custom_call.1} parent=1 // loop_exit
      _
    %367 = vsyncpa [#allocation3], 1
    %s368 = scalar_lea.sflag [#allocation3], 1
    %369 = vsyncpa %s368, 1

</llo_original>
